<compile_context>
chip_gen: v7x
topology: tpu7x:2x2x1
jax: 0.10.0
libtpu: 0.0.40
codegen_flags: <defaults>
</compile_context>

<pallas_src>
import functools

import jax
import jax.numpy as jnp
from jax.experimental import pallas as pl
from jax.experimental.pallas import tpu as pltpu

INPUT_SIZE = 8
HIDDEN_SIZE = 64
OUTPUT_SIZE = 3
OUTPUT_PAD = 128          # lane-dense padded output width
SUBLANE = 8               # f32 sublane grain
DEFAULT_TILE_B = 512      # batch rows per grid step (multiple of 8)


def _round_up(n, m):
    return ((n + m - 1) // m) * m


def dqn_kernel(x_ref, w1_ref, b1_ref, w2_ref, b2_ref, w3_ref, b3_ref, o_ref,
               *, use_bf16):
    x = x_ref[...]
    w1 = w1_ref[...]
    w2 = w2_ref[...]
    w3 = w3_ref[...]
    if use_bf16:
        x = x.astype(jnp.bfloat16)
        w1 = w1.astype(jnp.bfloat16)
        w2 = w2.astype(jnp.bfloat16)
        w3 = w3.astype(jnp.bfloat16)

    # fc1 + relu
    h1 = jnp.dot(x, w1, preferred_element_type=jnp.float32) + b1_ref[...]
    h1 = jnp.maximum(h1, 0.0)
    if use_bf16:
        h1 = h1.astype(jnp.bfloat16)
    # fc2 + relu
    h2 = jnp.dot(h1, w2, preferred_element_type=jnp.float32) + b2_ref[...]
    h2 = jnp.maximum(h2, 0.0)
    if use_bf16:
        h2 = h2.astype(jnp.bfloat16)
    # fc3 (no activation), lane-dense 128-wide store
    o_ref[...] = jnp.dot(h2, w3, preferred_element_type=jnp.float32) + b3_ref[...]


def dqn_forward(x, params, *, tile_b=DEFAULT_TILE_B, use_bf16=False):
    """x: (B, INPUT_SIZE) float32. params: dict of w1,b1,w2,b2,w3,b3."""
    B = x.shape[0]

    # Lane-dense padded last layer (padded weight/bias columns are zero).
    w3p = jnp.zeros((HIDDEN_SIZE, OUTPUT_PAD), jnp.float32)
    w3p = w3p.at[:, :OUTPUT_SIZE].set(params["w3"])
    b3p = jnp.zeros((1, OUTPUT_PAD), jnp.float32)
    b3p = b3p.at[:, :OUTPUT_SIZE].set(params["b3"])

    # Tile size: clamp to the (8-aligned) batch, keep on the sublane grain,
    # then pad the batch so every grid step gets a full tile.
    tb = max(SUBLANE, min(tile_b, _round_up(B, SUBLANE)))
    tb = _round_up(tb, SUBLANE)
    B_pad = _round_up(B, tb)
    if B_pad != B:
        x = jnp.pad(x, ((0, B_pad - B), (0, 0)))

    grid = (B_pad // tb,)

    weight_bytes = 4 * (
        INPUT_SIZE * HIDDEN_SIZE + HIDDEN_SIZE
        + HIDDEN_SIZE * HIDDEN_SIZE + HIDDEN_SIZE
        + HIDDEN_SIZE * OUTPUT_PAD + OUTPUT_PAD
    )
    flops = 2 * B_pad * (
        INPUT_SIZE * HIDDEN_SIZE
        + HIDDEN_SIZE * HIDDEN_SIZE
        + HIDDEN_SIZE * OUTPUT_PAD
    )
    bytes_accessed = B_pad * (INPUT_SIZE + OUTPUT_PAD) * 4 + weight_bytes

    kernel = functools.partial(dqn_kernel, use_bf16=use_bf16)

    out = pl.pallas_call(
        kernel,
        out_shape=jax.ShapeDtypeStruct((B_pad, OUTPUT_PAD), jnp.float32),
        grid_spec=pltpu.PrefetchScalarGridSpec(
            num_scalar_prefetch=0,
            grid=grid,
            in_specs=[
                pl.BlockSpec((tb, INPUT_SIZE), lambda i: (i, 0)),          # x tile
                pl.BlockSpec((INPUT_SIZE, HIDDEN_SIZE), lambda i: (0, 0)),  # w1
                pl.BlockSpec((1, HIDDEN_SIZE), lambda i: (0, 0)),           # b1
                pl.BlockSpec((HIDDEN_SIZE, HIDDEN_SIZE), lambda i: (0, 0)), # w2
                pl.BlockSpec((1, HIDDEN_SIZE), lambda i: (0, 0)),           # b2
                pl.BlockSpec((HIDDEN_SIZE, OUTPUT_PAD), lambda i: (0, 0)),  # w3 (padded)
                pl.BlockSpec((1, OUTPUT_PAD), lambda i: (0, 0)),            # b3 (padded)
            ],
            out_specs=pl.BlockSpec((tb, OUTPUT_PAD), lambda i: (i, 0)),
        ),
        compiler_params=pltpu.CompilerParams(
            dimension_semantics=("parallel",),     # megacore split on v7x
            vmem_limit_bytes=32 * 1024 * 1024,
        ),
        cost_estimate=pl.CostEstimate(
            flops=flops, transcendentals=0, bytes_accessed=bytes_accessed),
    )(x, params["w1"], params["b1"], params["w2"], params["b2"], w3p, b3p)

    # Drop the padded batch rows and padded output columns.
    return out[:B, :OUTPUT_SIZE]


def init_params(key):
    """Deterministic init mirroring PyTorch nn.Linear default:
    U(-1/sqrt(fan_in), 1/sqrt(fan_in)) for both weight and bias."""
    def linear(key, fan_in, fan_out):
        kw, kb = jax.random.split(key)
        bound = 1.0 / jnp.sqrt(fan_in)
        w = jax.random.uniform(kw, (fan_in, fan_out), jnp.float32, -bound, bound)
        b = jax.random.uniform(kb, (1, fan_out), jnp.float32, -bound, bound)
        return w, b

    k1, k2, k3 = jax.random.split(key, 3)
    w1, b1 = linear(k1, INPUT_SIZE, HIDDEN_SIZE)
    w2, b2 = linear(k2, HIDDEN_SIZE, HIDDEN_SIZE)
    w3, b3 = linear(k3, HIDDEN_SIZE, OUTPUT_SIZE)
    return {"w1": w1, "b1": b1, "w2": w2, "b2": b2, "w3": w3, "b3": b3}


def dqn_reference(x, p):
    h1 = jnp.maximum(x @ p["w1"] + p["b1"], 0.0)
    h2 = jnp.maximum(h1 @ p["w2"] + p["b2"], 0.0)
    return h2 @ p["w3"] + p["b3"]


if __name__ == "__main__":
    key = jax.random.PRNGKey(0)
    kx, kp, kx2 = jax.random.split(key, 3)
    params = init_params(kp)

    # Small batch (action-selection sized) — single 8-row tile, one grid step.
    batch = 4
    x = jax.random.normal(kx, (batch, INPUT_SIZE), jnp.float32)
    out = jax.block_until_ready(dqn_forward(x, params))
    ref = dqn_reference(x, params)
    assert out.shape == (batch, OUTPUT_SIZE)
    assert jnp.allclose(out, ref, atol=1e-5, rtol=1e-5)

    # Larger ragged batch — exercises the tiled grid + batch padding path.
    batch2 = 100
    x2 = jax.random.normal(kx2, (batch2, INPUT_SIZE), jnp.float32)
    out2 = jax.block_until_ready(dqn_forward(x2, params, tile_b=32))
    ref2 = dqn_reference(x2, params)
    assert out2.shape == (batch2, OUTPUT_SIZE)
    assert jnp.allclose(out2, ref2, atol=1e-5, rtol=1e-5)

    print("KERNEL_OK")
</pallas_src>

<mosaic_0001>
module attributes {stable_mosaic.version = 11 : i64} {
  func.func @dqn_kernel(%arg0: i32, %arg1: memref<8x8xf32, #tpu.memory_space<vmem>>, %arg2: memref<8x64xf32, #tpu.memory_space<vmem>>, %arg3: memref<1x64xf32, #tpu.memory_space<vmem>>, %arg4: memref<64x64xf32, #tpu.memory_space<vmem>>, %arg5: memref<1x64xf32, #tpu.memory_space<vmem>>, %arg6: memref<64x128xf32, #tpu.memory_space<vmem>>, %arg7: memref<1x128xf32, #tpu.memory_space<vmem>>, %arg8: memref<8x128xf32, #tpu.memory_space<vmem>>) attributes {dimension_semantics = [#tpu.dimension_semantics<parallel>], iteration_bounds = array<i64: 1>, scalar_prefetch = 0 : i64, scratch_operands = 0 : i64, tpu.core_type = #tpu.core_type<tc>, window_params = [{transform_indices = @transform_0, window_bounds = array<i64: 8, 8>}, {pipeline_mode = #tpu.pipeline_mode<synchronous>, transform_indices = @transform_1, window_bounds = array<i64: 8, 64>}, {pipeline_mode = #tpu.pipeline_mode<synchronous>, transform_indices = @transform_2, window_bounds = array<i64: 1, 64>}, {pipeline_mode = #tpu.pipeline_mode<synchronous>, transform_indices = @transform_3, window_bounds = array<i64: 64, 64>}, {pipeline_mode = #tpu.pipeline_mode<synchronous>, transform_indices = @transform_4, window_bounds = array<i64: 1, 64>}, {pipeline_mode = #tpu.pipeline_mode<synchronous>, transform_indices = @transform_5, window_bounds = array<i64: 64, 128>}, {pipeline_mode = #tpu.pipeline_mode<synchronous>, transform_indices = @transform_6, window_bounds = array<i64: 1, 128>}, {transform_indices = @transform_7, window_bounds = array<i64: 8, 128>}]} {
    %c0 = arith.constant 0 : index
    %c0_0 = arith.constant 0 : index
    %0 = vector.load %arg1[%c0, %c0_0] : memref<8x8xf32, #tpu.memory_space<vmem>>, vector<8x8xf32>
    %c0_1 = arith.constant 0 : index
    %c0_2 = arith.constant 0 : index
    %1 = vector.load %arg2[%c0_1, %c0_2] : memref<8x64xf32, #tpu.memory_space<vmem>>, vector<8x64xf32>
    %c0_3 = arith.constant 0 : index
    %c0_4 = arith.constant 0 : index
    %2 = vector.load %arg4[%c0_3, %c0_4] : memref<64x64xf32, #tpu.memory_space<vmem>>, vector<64x64xf32>
    %c0_5 = arith.constant 0 : index
    %c0_6 = arith.constant 0 : index
    %3 = vector.load %arg6[%c0_5, %c0_6] : memref<64x128xf32, #tpu.memory_space<vmem>>, vector<64x128xf32>
    %cst = arith.constant dense<0.000000e+00> : vector<8x64xf32>
    %4 = tpu.matmul %0, %1, %cst {dimension_numbers = #tpu.dot_dimension_numbers<[1], [0], [0], [1], [0, 0, 1, 1], [], []>} : vector<8x8xf32>, vector<8x64xf32>, vector<8x64xf32> -> vector<8x64xf32>
    %c0_7 = arith.constant 0 : index
    %c0_8 = arith.constant 0 : index
    %5 = vector.load %arg3[%c0_7, %c0_8] : memref<1x64xf32, #tpu.memory_space<vmem>>, vector<1x64xf32>
    %6 = vector.broadcast %5 : vector<1x64xf32> to vector<8x64xf32>
    %7 = arith.addf %4, %6 : vector<8x64xf32>
    %cst_9 = arith.constant 0.000000e+00 : f32
    %8 = vector.broadcast %cst_9 : f32 to vector<8x64xf32>
    %9 = arith.maximumf %7, %8 : vector<8x64xf32>
    %cst_10 = arith.constant dense<0.000000e+00> : vector<8x64xf32>
    %10 = tpu.matmul %9, %2, %cst_10 {dimension_numbers = #tpu.dot_dimension_numbers<[1], [0], [0], [1], [0, 0, 1, 1], [], []>} : vector<8x64xf32>, vector<64x64xf32>, vector<8x64xf32> -> vector<8x64xf32>
    %c0_11 = arith.constant 0 : index
    %c0_12 = arith.constant 0 : index
    %11 = vector.load %arg5[%c0_11, %c0_12] : memref<1x64xf32, #tpu.memory_space<vmem>>, vector<1x64xf32>
    %12 = vector.broadcast %11 : vector<1x64xf32> to vector<8x64xf32>
    %13 = arith.addf %10, %12 : vector<8x64xf32>
    %cst_13 = arith.constant 0.000000e+00 : f32
    %14 = vector.broadcast %cst_13 : f32 to vector<8x64xf32>
    %15 = arith.maximumf %13, %14 : vector<8x64xf32>
    %cst_14 = arith.constant dense<0.000000e+00> : vector<8x128xf32>
    %16 = tpu.matmul %15, %3, %cst_14 {dimension_numbers = #tpu.dot_dimension_numbers<[1], [0], [0], [1], [0, 0, 1, 1], [], []>} : vector<8x64xf32>, vector<64x128xf32>, vector<8x128xf32> -> vector<8x128xf32>
    %c0_15 = arith.constant 0 : index
    %c0_16 = arith.constant 0 : index
    %17 = vector.load %arg7[%c0_15, %c0_16] : memref<1x128xf32, #tpu.memory_space<vmem>>, vector<1x128xf32>
    %18 = vector.broadcast %17 : vector<1x128xf32> to vector<8x128xf32>
    %19 = arith.addf %16, %18 : vector<8x128xf32>
    %c0_17 = arith.constant 0 : index
    %c0_18 = arith.constant 0 : index
    %20 = vector.load %arg8[%c0_17, %c0_18] : memref<8x128xf32, #tpu.memory_space<vmem>>, vector<8x128xf32>
    tpu.vector_store %arg8[%c0_17, %c0_18], %19 {strides = array<i32>} : memref<8x128xf32, #tpu.memory_space<vmem>>, vector<8x128xf32>,
    return
  }
  func.func @transform_0(%arg0: i32) -> (i32, i32) {
    %c0_i32 = arith.constant 0 : i32
    %c0_i32_0 = arith.constant 0 : i32
    return %arg0, %c0_i32 : i32, i32
  }
  func.func @transform_1(%arg0: i32) -> (i32, i32) {
    %c0_i32 = arith.constant 0 : i32
    %c0_i32_0 = arith.constant 0 : i32
    %c0_i32_1 = arith.constant 0 : i32
    return %c0_i32, %c0_i32_0 : i32, i32
  }
  func.func @transform_2(%arg0: i32) -> (i32, i32) {
    %c0_i32 = arith.constant 0 : i32
    %c0_i32_0 = arith.constant 0 : i32
    %c0_i32_1 = arith.constant 0 : i32
    return %c0_i32, %c0_i32_0 : i32, i32
  }
  func.func @transform_3(%arg0: i32) -> (i32, i32) {
    %c0_i32 = arith.constant 0 : i32
    %c0_i32_0 = arith.constant 0 : i32
    %c0_i32_1 = arith.constant 0 : i32
    return %c0_i32, %c0_i32_0 : i32, i32
  }
  func.func @transform_4(%arg0: i32) -> (i32, i32) {
    %c0_i32 = arith.constant 0 : i32
    %c0_i32_0 = arith.constant 0 : i32
    %c0_i32_1 = arith.constant 0 : i32
    return %c0_i32, %c0_i32_0 : i32, i32
  }
  func.func @transform_5(%arg0: i32) -> (i32, i32) {
    %c0_i32 = arith.constant 0 : i32
    %c0_i32_0 = arith.constant 0 : i32
    %c0_i32_1 = arith.constant 0 : i32
    return %c0_i32, %c0_i32_0 : i32, i32
  }
  func.func @transform_6(%arg0: i32) -> (i32, i32) {
    %c0_i32 = arith.constant 0 : i32
    %c0_i32_0 = arith.constant 0 : i32
    %c0_i32_1 = arith.constant 0 : i32
    return %c0_i32, %c0_i32_0 : i32, i32
  }
  func.func @transform_7(%arg0: i32) -> (i32, i32) {
    %c0_i32 = arith.constant 0 : i32
    %c0_i32_0 = arith.constant 0 : i32
    return %arg0, %c0_i32 : i32, i32
  }
}

</mosaic_0001>

<llo_original>
// kernel: tpu_custom_call.1
$region0: #{tpu_custom_call.1}
  #allocation0 [shape = 'u32[]', space=smem, size = 0x4, offset = 0x4, fixed_abs, tag = 'smem constant byte address 0x4 - core index']
  #allocation1 [shape = 'u32[144,128]{1,0:T(1,128)}', space=vmem, size = 0x12000, scoped, tag = 'internal scratch']
  %s0 = inlined_call_operand.hbm [shape: f32[8,8], index: 0, kind: input, shape index: {}]
  %s1 = inlined_call_operand.hbm [shape: f32[8,64], index: 1, kind: input, shape index: {}]
  %s2 = inlined_call_operand.vmem [shape: f32[1,64], index: 2, kind: input, shape index: {}]
  %s3 = inlined_call_operand.hbm [shape: f32[64,64], index: 3, kind: input, shape index: {}]
  %s4 = inlined_call_operand.vmem [shape: f32[1,64], index: 4, kind: input, shape index: {}]
  %s5 = inlined_call_operand.hbm [shape: f32[64,128], index: 5, kind: input, shape index: {}]
  %s6 = inlined_call_operand.vmem [shape: f32[1,128], index: 6, kind: input, shape index: {}]
  %s7 = inlined_call_operand.hbm [shape: f32[8,128], index: 7, kind: output, shape index: {}]
  %s8 = sld [smem:[#allocation0]]
  $region54: #{tpu_custom_call.1} parent=0
    _
  %s10 = ssub.s32 1, %s8
  %s11 = scalar_select 0, %s10, %s8
  $region1: #{tpu_custom_call.1} parent=0
    #allocation2 [shape = 'u8[4096]{0}', space=vmem, size = 0x1000, scoped, tag = 'input window, operand 0, single buffered']
    #allocation3 [shape = 's32[1]{0}', space=sflag, size = 0x4, scoped, tag = 'scoped memory for tpu_custom_call.1']
    #allocation4 [shape = 's32[1]{0}', space=sflag, size = 0x4, scoped, tag = 'scoped memory for tpu_custom_call.1']
    #allocation5 [shape = 'u8[4096]{0}', space=vmem, size = 0x1000, scoped, tag = 'input window, operand 1, single buffered']
    #allocation6 [shape = 's32[1]{0}', space=sflag, size = 0x4, scoped, tag = 'scoped memory for tpu_custom_call.1']
    #allocation7 [shape = 'u8[32768]{0}', space=vmem, size = 0x8000, scoped, tag = 'input window, operand 3, single buffered']
    #allocation8 [shape = 'u8[32768]{0}', space=vmem, size = 0x8000, scoped, tag = 'input window, operand 5, single buffered']
    #allocation9 [shape = 's32[1]{0}', space=sflag, size = 0x4, scoped, tag = 'scoped memory for tpu_custom_call.1']
    #allocation10 [shape = 'u8[4096]{0}', space=vmem, size = 0x1000, scoped, tag = 'output window, operand 0, single buffered']
    %12 = vsyncpa [#allocation3], 0
    %13 = vsyncpa [#allocation6], 0
    %14 = vsyncpa [#allocation9], 0
    %15 = vsyncpa [#allocation4], 0
    // Predicated region
    $region2: #{tpu_custom_call.1} parent=1 // pred_check
      _
    $region3: #{tpu_custom_call.1} parent=1 // pred_check_branch
      %17 = sbr.rel (0) target = $region5
    $region4: #{tpu_custom_call.1} parent=1 // pred_region
      %s19 = ssub.s32 128, 128
      %20 = vsyncadd [#allocation3], %s19
      %s22 = sshll.u32 [#allocation2], 4
      %s23 = int_to_ptr.vmem [resolvable:$true] %s22
      %25 = dma.hbm_to_vmem [thread:$0]  %s0, 128, %s23, [#allocation3]
    $region5: #{tpu_custom_call.1} parent=1 // pred_fallthru
      _
    // Predicated region
    $region6: #{tpu_custom_call.1} parent=1 // pred_check
      _
    $region7: #{tpu_custom_call.1} parent=1 // pred_check_branch
      %27 = sbr.rel (0) target = $region9
    $region8: #{tpu_custom_call.1} parent=1 // pred_region
      %s29 = ssub.s32 128, 128
      %30 = vsyncadd [#allocation6], %s29
      %s32 = sshll.u32 [#allocation5], 4
      %s33 = int_to_ptr.vmem [resolvable:$true] %s32
      %35 = dma.hbm_to_vmem [thread:$0]  %s1, 128, %s33, [#allocation6]
    $region9: #{tpu_custom_call.1} parent=1 // pred_fallthru
      _
    // Predicated region
    $region10: #{tpu_custom_call.1} parent=1 // pred_check
      _
    $region11: #{tpu_custom_call.1} parent=1 // pred_check_branch
      %37 = sbr.rel (0) target = $region13
    $region12: #{tpu_custom_call.1} parent=1 // pred_region
      _
    $region13: #{tpu_custom_call.1} parent=1 // pred_fallthru
      _
    // Predicated region
    $region14: #{tpu_custom_call.1} parent=1 // pred_check
      _
    $region15: #{tpu_custom_call.1} parent=1 // pred_check_branch
      %39 = sbr.rel (0) target = $region17
    $region16: #{tpu_custom_call.1} parent=1 // pred_region
      %s41 = ssub.s32 1024, 1024
      %42 = vsyncadd [#allocation6], %s41
      %s43 = sshll.u32 [#allocation7], 4
      %s44 = int_to_ptr.vmem [resolvable:$true] %s43
      %49 = dma.hbm_to_vmem [thread:$0]  %s3, 1024, %s44, [#allocation6], 128, 128, 8
    $region17: #{tpu_custom_call.1} parent=1 // pred_fallthru
      _
    // Predicated region
    $region18: #{tpu_custom_call.1} parent=1 // pred_check
      _
    $region19: #{tpu_custom_call.1} parent=1 // pred_check_branch
      %51 = sbr.rel (0) target = $region21
    $region20: #{tpu_custom_call.1} parent=1 // pred_region
      _
    $region21: #{tpu_custom_call.1} parent=1 // pred_fallthru
      _
    // Predicated region
    $region22: #{tpu_custom_call.1} parent=1 // pred_check
      _
    $region23: #{tpu_custom_call.1} parent=1 // pred_check_branch
      %53 = sbr.rel (0) target = $region25
    $region24: #{tpu_custom_call.1} parent=1 // pred_region
      %s55 = ssub.s32 1024, 1024
      %56 = vsyncadd [#allocation9], %s55
      %s57 = sshll.u32 [#allocation8], 4
      %s58 = int_to_ptr.vmem [resolvable:$true] %s57
      %63 = dma.hbm_to_vmem [thread:$0]  %s5, 1024, %s58, [#allocation9], 128, 128, 8
    $region25: #{tpu_custom_call.1} parent=1 // pred_fallthru
      _
    // Predicated region
    $region26: #{tpu_custom_call.1} parent=1 // pred_check
      _
    $region27: #{tpu_custom_call.1} parent=1 // pred_check_branch
      %65 = sbr.rel (0) target = $region29
    $region28: #{tpu_custom_call.1} parent=1 // pred_region
      _
    $region29: #{tpu_custom_call.1} parent=1 // pred_fallthru
      _
    // Predicated region
    $region30: #{tpu_custom_call.1} parent=1 // pred_check
      _
    $region31: #{tpu_custom_call.1} parent=1 // pred_check_branch
      %67 = sbr.rel (0) target = $region33
    $region32: #{tpu_custom_call.1} parent=1 // pred_region
      %68 = dma.done [#allocation3], 128
    $region33: #{tpu_custom_call.1} parent=1 // pred_fallthru
      _
    // Predicated region
    $region34: #{tpu_custom_call.1} parent=1 // pred_check
      _
    $region35: #{tpu_custom_call.1} parent=1 // pred_check_branch
      %70 = sbr.rel (0) target = $region37
    $region36: #{tpu_custom_call.1} parent=1 // pred_region
      %71 = dma.done [#allocation6], 128
    $region37: #{tpu_custom_call.1} parent=1 // pred_fallthru
      _
    // Predicated region
    $region38: #{tpu_custom_call.1} parent=1 // pred_check
      _
    $region39: #{tpu_custom_call.1} parent=1 // pred_check_branch
      %73 = sbr.rel (0) target = $region41
    $region40: #{tpu_custom_call.1} parent=1 // pred_region
      %74 = dma.done [#allocation6], 1024
    $region41: #{tpu_custom_call.1} parent=1 // pred_fallthru
      _
    // Predicated region
    $region42: #{tpu_custom_call.1} parent=1 // pred_check
      _
    $region43: #{tpu_custom_call.1} parent=1 // pred_check_branch
      %76 = sbr.rel (0) target = $region45
    $region44: #{tpu_custom_call.1} parent=1 // pred_region
      %77 = dma.done [#allocation9], 1024
    $region45: #{tpu_custom_call.1} parent=1 // pred_fallthru
      _
    %v78 = vld [vmem:[#allocation2] sm:$0xff]
    %v79 = vld [vmem:[#allocation5] sm:$0xff]
    %v80 = vld [vmem:[#allocation7] sm:$0xff]
    %v81 = vld [vmem:[#allocation7 + $0x8] sm:$0xff]
    %v82 = vld [vmem:[#allocation7 + $0x10] sm:$0xff]
    %v83 = vld [vmem:[#allocation7 + $0x18] sm:$0xff]
    %v84 = vld [vmem:[#allocation7 + $0x20] sm:$0xff]
    %v85 = vld [vmem:[#allocation7 + $0x28] sm:$0xff]
    %v86 = vld [vmem:[#allocation7 + $0x30] sm:$0xff]
    %v87 = vld [vmem:[#allocation7 + $0x38] sm:$0xff]
    %v88 = vld [vmem:[#allocation8] sm:$0xff]
    %v89 = vld [vmem:[#allocation8 + $0x8] sm:$0xff]
    %v90 = vld [vmem:[#allocation8 + $0x10] sm:$0xff]
    %v91 = vld [vmem:[#allocation8 + $0x18] sm:$0xff]
    %v92 = vld [vmem:[#allocation8 + $0x20] sm:$0xff]
    %v93 = vld [vmem:[#allocation8 + $0x28] sm:$0xff]
    %v94 = vld [vmem:[#allocation8 + $0x30] sm:$0xff]
    %v95 = vld [vmem:[#allocation8 + $0x38] sm:$0xff]
    %v96 = vld [vmem:[%s2] sm:$0x1]
    %v98 = vlaneseq
    %v99 = vshrl.u32 %v98, 7
    %v100 = vsub.s32 0, %v99
    %v101 = vrot.slane %v96, %v100
    %vm103 = vcmask 64512
    %v105 = vsel %vm103, %v78, 0
    %107 = vmatprep.subr.mxu0 0.0
    %108 = vmatpush1.msra.mxu0 %v79
    %109 = vmatprep.subr.mxu0 0.0
    %110 = vmatpush1.msra.mxu0 0.0
    %111 = vmatprep.subr.mxu0 0.0
    %112 = vmatpush1.msra.mxu0 0.0
    %113 = vmatprep.subr.mxu0 0.0
    %114 = vmatpush1.msra.mxu0 0.0
    %115 = vmatprep.subr.mxu0 0.0
    %116 = vmatpush1.msra.mxu0 0.0
    %117 = vmatprep.subr.mxu0 0.0
    %118 = vmatpush1.msra.mxu0 0.0
    %119 = vmatprep.subr.mxu0 0.0
    %120 = vmatpush1.msra.mxu0 0.0
    %121 = vmatprep.subr.mxu0 0.0
    %122 = vmatpush1.msra.mxu0 0.0
    %123 = vmatprep.subr.mxu0 0.0
    %124 = vmatpush1.msra.mxu0 0.0
    %125 = vmatprep.subr.mxu0 0.0
    %126 = vmatpush1.msra.mxu0 0.0
    %127 = vmatprep.subr.mxu0 0.0
    %128 = vmatpush1.msra.mxu0 0.0
    %129 = vmatprep.subr.mxu0 0.0
    %130 = vmatpush1.msra.mxu0 0.0
    %131 = vmatprep.subr.mxu0 0.0
    %132 = vmatpush1.msra.mxu0 0.0
    %133 = vmatprep.subr.mxu0 0.0
    %134 = vmatpush1.msra.mxu0 0.0
    %135 = vmatprep.subr.mxu0 0.0
    %136 = vmatpush1.msra.mxu0 0.0
    %137 = vmatprep.subr.mxu0 0.0
    %138 = vmatpush1.msra.mxu0 0.0
    %139 = vmatprep.subr.mxu0 0.0
    %140 = vmatpush1.msra.mxu0 0.0
    %141 = vmatprep.subr.mxu0 0.0
    %142 = vmatpush1.msra.mxu0 0.0
    %143 = vmatprep.subr.mxu0 0.0
    %144 = vmatpush1.msra.mxu0 0.0
    %145 = vmatprep.subr.mxu0 0.0
    %146 = vmatpush1.msra.mxu0 0.0
    %147 = vmatprep.subr.mxu0 0.0
    %148 = vmatpush1.msra.mxu0 0.0
    %149 = vmatprep.subr.mxu0 0.0
    %150 = vmatpush1.msra.mxu0 0.0
    %151 = vmatprep.subr.mxu0 0.0
    %152 = vmatpush1.msra.mxu0 0.0
    %153 = vmatprep.subr.mxu0 0.0
    %154 = vmatpush1.msra.mxu0 0.0
    %155 = vmatprep.subr.mxu0 0.0
    %156 = vmatpush1.msra.mxu0 0.0
    %157 = vmatprep.subr.mxu0 0.0
    %158 = vmatpush1.msra.mxu0 0.0
    %159 = vmatprep.subr.mxu0 0.0
    %160 = vmatpush1.msra.mxu0 0.0
    %161 = vmatprep.subr.mxu0 0.0
    %162 = vmatpush1.msra.mxu0 0.0
    %163 = vmatprep.subr.mxu0 0.0
    %164 = vmatpush1.msra.mxu0 0.0
    %165 = vmatprep.subr.mxu0 0.0
    %166 = vmatpush1.msra.mxu0 0.0
    %167 = vmatprep.subr.mxu0 0.0
    %168 = vmatpush1.msra.mxu0 0.0
    %169 = vmatprep.subr.mxu0 0.0
    %170 = vmatpush1.msra.mxu0 0.0
    %171 = vmatprep.mubr.f32.mxu0 0.0
    %172 = vmatmul.mubr.f32.gmra.mrb[0].mxu0 %v105
    %v173 = vpop.f32.mrb[0].mxu0
    %v174 = vadd.f32 %v101, %v173
    %v175 = vpop.f32.mrb[0].mxu0
    %176 = vdwg.mxu0
    %v177 = vmax.f32 %v174, 0.0
    %v178 = vld [vmem:[%s4] sm:$0x1]
    %v180 = vlaneseq
    %v181 = vshrl.u32 %v180, 7
    %v182 = vsub.s32 0, %v181
    %v183 = vrot.slane %v178, %v182
    %vm185 = vcmask 523264
    %v187 = vsel %vm185, %v177, 0
    %189 = vmatprep.subr.mxu0 0.0
    %190 = vmatpush1.msra.mxu0 %v80
    %191 = vmatprep.subr.mxu0 0.0
    %192 = vmatpush1.msra.mxu0 %v81
    %193 = vmatprep.subr.mxu0 0.0
    %194 = vmatpush1.msra.mxu0 %v82
    %195 = vmatprep.subr.mxu0 0.0
    %196 = vmatpush1.msra.mxu0 %v83
    %197 = vmatprep.subr.mxu0 0.0
    %198 = vmatpush1.msra.mxu0 %v84
    %199 = vmatprep.subr.mxu0 0.0
    %200 = vmatpush1.msra.mxu0 %v85
    %201 = vmatprep.subr.mxu0 0.0
    %202 = vmatpush1.msra.mxu0 %v86
    %203 = vmatprep.subr.mxu0 0.0
    %204 = vmatpush1.msra.mxu0 %v87
    %205 = vmatprep.subr.mxu0 0.0
    %206 = vmatpush1.msra.mxu0 0.0
    %207 = vmatprep.subr.mxu0 0.0
    %208 = vmatpush1.msra.mxu0 0.0
    %209 = vmatprep.subr.mxu0 0.0
    %210 = vmatpush1.msra.mxu0 0.0
    %211 = vmatprep.subr.mxu0 0.0
    %212 = vmatpush1.msra.mxu0 0.0
    %213 = vmatprep.subr.mxu0 0.0
    %214 = vmatpush1.msra.mxu0 0.0
    %215 = vmatprep.subr.mxu0 0.0
    %216 = vmatpush1.msra.mxu0 0.0
    %217 = vmatprep.subr.mxu0 0.0
    %218 = vmatpush1.msra.mxu0 0.0
    %219 = vmatprep.subr.mxu0 0.0
    %220 = vmatpush1.msra.mxu0 0.0
    %221 = vmatprep.subr.mxu0 0.0
    %222 = vmatpush1.msra.mxu0 0.0
    %223 = vmatprep.subr.mxu0 0.0
    %224 = vmatpush1.msra.mxu0 0.0
    %225 = vmatprep.subr.mxu0 0.0
    %226 = vmatpush1.msra.mxu0 0.0
    %227 = vmatprep.subr.mxu0 0.0
    %228 = vmatpush1.msra.mxu0 0.0
    %229 = vmatprep.subr.mxu0 0.0
    %230 = vmatpush1.msra.mxu0 0.0
    %231 = vmatprep.subr.mxu0 0.0
    %232 = vmatpush1.msra.mxu0 0.0
    %233 = vmatprep.subr.mxu0 0.0
    %234 = vmatpush1.msra.mxu0 0.0
    %235 = vmatprep.subr.mxu0 0.0
    %236 = vmatpush1.msra.mxu0 0.0
    %237 = vmatprep.subr.mxu0 0.0
    %238 = vmatpush1.msra.mxu0 0.0
    %239 = vmatprep.subr.mxu0 0.0
    %240 = vmatpush1.msra.mxu0 0.0
    %241 = vmatprep.subr.mxu0 0.0
    %242 = vmatpush1.msra.mxu0 0.0
    %243 = vmatprep.subr.mxu0 0.0
    %244 = vmatpush1.msra.mxu0 0.0
    %245 = vmatprep.subr.mxu0 0.0
    %246 = vmatpush1.msra.mxu0 0.0
    %247 = vmatprep.subr.mxu0 0.0
    %248 = vmatpush1.msra.mxu0 0.0
    %249 = vmatprep.subr.mxu0 0.0
    %250 = vmatpush1.msra.mxu0 0.0
    %251 = vmatprep.subr.mxu0 0.0
    %252 = vmatpush1.msra.mxu0 0.0
    %253 = vmatprep.mubr.f32.mxu0 0.0
    %254 = vmatmul.mubr.f32.gmra.mrb[0].mxu0 %v187
    %v255 = vpop.f32.mrb[0].mxu0
    %v256 = vadd.f32 %v183, %v255
    %v257 = vpop.f32.mrb[0].mxu0
    %258 = vdwg.mxu0
    %v259 = vmax.f32 %v256, 0.0
    %v260 = vld [vmem:[%s6] sm:$0x1]
    %v262 = vlaneseq
    %v263 = vshrl.u32 %v262, 7
    %v264 = vsub.s32 0, %v263
    %v265 = vrot.slane %v260, %v264
    %v268 = vsel %vm185, %v259, 0
    %270 = vmatprep.subr.mxu0 0.0
    %271 = vmatpush1.msra.mxu0 %v88
    %272 = vmatprep.subr.mxu0 0.0
    %273 = vmatpush1.msra.mxu0 %v89
    %274 = vmatprep.subr.mxu0 0.0
    %275 = vmatpush1.msra.mxu0 %v90
    %276 = vmatprep.subr.mxu0 0.0
    %277 = vmatpush1.msra.mxu0 %v91
    %278 = vmatprep.subr.mxu0 0.0
    %279 = vmatpush1.msra.mxu0 %v92
    %280 = vmatprep.subr.mxu0 0.0
    %281 = vmatpush1.msra.mxu0 %v93
    %282 = vmatprep.subr.mxu0 0.0
    %283 = vmatpush1.msra.mxu0 %v94
    %284 = vmatprep.subr.mxu0 0.0
    %285 = vmatpush1.msra.mxu0 %v95
    %286 = vmatprep.subr.mxu0 0.0
    %287 = vmatpush1.msra.mxu0 0.0
    %288 = vmatprep.subr.mxu0 0.0
    %289 = vmatpush1.msra.mxu0 0.0
    %290 = vmatprep.subr.mxu0 0.0
    %291 = vmatpush1.msra.mxu0 0.0
    %292 = vmatprep.subr.mxu0 0.0
    %293 = vmatpush1.msra.mxu0 0.0
    %294 = vmatprep.subr.mxu0 0.0
    %295 = vmatpush1.msra.mxu0 0.0
    %296 = vmatprep.subr.mxu0 0.0
    %297 = vmatpush1.msra.mxu0 0.0
    %298 = vmatprep.subr.mxu0 0.0
    %299 = vmatpush1.msra.mxu0 0.0
    %300 = vmatprep.subr.mxu0 0.0
    %301 = vmatpush1.msra.mxu0 0.0
    %302 = vmatprep.subr.mxu0 0.0
    %303 = vmatpush1.msra.mxu0 0.0
    %304 = vmatprep.subr.mxu0 0.0
    %305 = vmatpush1.msra.mxu0 0.0
    %306 = vmatprep.subr.mxu0 0.0
    %307 = vmatpush1.msra.mxu0 0.0
    %308 = vmatprep.subr.mxu0 0.0
    %309 = vmatpush1.msra.mxu0 0.0
    %310 = vmatprep.subr.mxu0 0.0
    %311 = vmatpush1.msra.mxu0 0.0
    %312 = vmatprep.subr.mxu0 0.0
    %313 = vmatpush1.msra.mxu0 0.0
    %314 = vmatprep.subr.mxu0 0.0
    %315 = vmatpush1.msra.mxu0 0.0
    %316 = vmatprep.subr.mxu0 0.0
    %317 = vmatpush1.msra.mxu0 0.0
    %318 = vmatprep.subr.mxu0 0.0
    %319 = vmatpush1.msra.mxu0 0.0
    %320 = vmatprep.subr.mxu0 0.0
    %321 = vmatpush1.msra.mxu0 0.0
    %322 = vmatprep.subr.mxu0 0.0
    %323 = vmatpush1.msra.mxu0 0.0
    %324 = vmatprep.subr.mxu0 0.0
    %325 = vmatpush1.msra.mxu0 0.0
    %326 = vmatprep.subr.mxu0 0.0
    %327 = vmatpush1.msra.mxu0 0.0
    %328 = vmatprep.subr.mxu0 0.0
    %329 = vmatpush1.msra.mxu0 0.0
    %330 = vmatprep.subr.mxu0 0.0
    %331 = vmatpush1.msra.mxu0 0.0
    %332 = vmatprep.subr.mxu0 0.0
    %333 = vmatpush1.msra.mxu0 0.0
    %334 = vmatprep.mubr.f32.mxu0 0.0
    %335 = vmatmul.mubr.f32.gmra.mrb[0].mxu0 %v268
    %v336 = vpop.f32.mrb[0].mxu0
    %v337 = vadd.f32 %v265, %v336
    %v338 = vpop.f32.mrb[0].mxu0
    %339 = vdwg.mxu0
    %340 = vst [vmem:[#allocation10] sm:$0xff] %v337
    // Predicated region
    $region46: #{tpu_custom_call.1} parent=1 // pred_check
      _
    $region47: #{tpu_custom_call.1} parent=1 // pred_check_branch
      %342 = sbr.rel (0) target = $region49
    $region48: #{tpu_custom_call.1} parent=1 // pred_region
      %s344 = ssub.s32 128, 128
      %345 = vsyncadd [#allocation4], %s344
      %s347 = sshll.u32 [#allocation10], 4
      %s348 = int_to_ptr.vmem [resolvable:$true] %s347
      %350 = dma.vmem_to_hbm [thread:$0]  %s348, 128, %s7, [#allocation4]
    $region49: #{tpu_custom_call.1} parent=1 // pred_fallthru
      _
    // Predicated region
    $region50: #{tpu_custom_call.1} parent=1 // pred_check
      _
    $region51: #{tpu_custom_call.1} parent=1 // pred_check_branch
      %352 = sbr.rel (0) target = $region53
    $region52: #{tpu_custom_call.1} parent=1 // pred_region
      %353 = dma.done [#allocation4], 128
    $region53: #{tpu_custom_call.1} parent=1 // pred_fallthru
      _
    %354 = vsyncpa [#allocation3], 1
    %355 = vsyncpa [#allocation6], 1
    %356 = vsyncpa [#allocation9], 1
    %357 = vsyncpa [#allocation4], 1

</llo_original>
